<compile_context>
chip_gen: v5e
topology: v5e:2x2
jax: 0.10.0
libtpu: 0.0.40
codegen_flags: <defaults>
</compile_context>

<pallas_src>
import functools

import jax
import jax.numpy as jnp
from jax import lax
from jax.experimental import pallas as pl
from jax.experimental.pallas import tpu as pltpu


NEG_SLOPE = 0.01   # nn.LeakyReLU default negative_slope
NUM_LABELS = 4     # TODO(synk): stand-in for len(Label)
POOL_K = 5         # MaxPool3d(kernel_size=5) -> stride defaults to 5, VALID


def _round_up(x: int, m: int) -> int:
    return (x + m - 1) // m * m


def _leaky_relu(v):
    return jnp.where(v > 0, v, NEG_SLOPE * v)


# ---------------------------------------------------------------------------
# Pallas kernel: fused 4-layer MLP (matmul + bias + LeakyReLU x3, final linear)
# ---------------------------------------------------------------------------
def _fused_mlp_kernel(x_ref, w0_ref, b0_ref, w1_ref, b1_ref, w2_ref, b2_ref,
                      w3_ref, b3_ref, o_ref):
    # x_ref: (TM, K0) row tile; weights are (in, out) full resident blocks.
    h = jnp.dot(x_ref[...], w0_ref[...],
                preferred_element_type=jnp.float32) + b0_ref[...]
    h = _leaky_relu(h)
    h = jnp.dot(h, w1_ref[...],
                preferred_element_type=jnp.float32) + b1_ref[...]
    h = _leaky_relu(h)
    h = jnp.dot(h, w2_ref[...],
                preferred_element_type=jnp.float32) + b2_ref[...]
    h = _leaky_relu(h)
    out = jnp.dot(h, w3_ref[...],
                  preferred_element_type=jnp.float32) + b3_ref[...]
    o_ref[...] = out.astype(o_ref.dtype)


# ---------------------------------------------------------------------------
# Forward: MaxPool3d + Flatten (plain-JAX glue) + fused Pallas MLP
# ---------------------------------------------------------------------------
def fully_connected_forward(x, params, *, tile_m: int = 512):
    # ---- MaxPool3d(kernel_size=5): kernel=stride=5, no padding (floor mode)
    # TODO(synk): maxpool3d kept as lax.reduce_window glue (tiny reduction,
    #             not the hot path).
    pooled = lax.reduce_window(
        x, -jnp.inf, lax.max,
        window_dimensions=(1, 1, POOL_K, POOL_K, POOL_K),
        window_strides=(1, 1, POOL_K, POOL_K, POOL_K),
        padding="VALID")
    N = x.shape[0]
    flat = pooled.reshape(N, -1)                       # Flatten(start_dim=1)

    w0, b0 = params["w0"], params["b0"]                # (512, K0), (512,)
    w1, b1 = params["w1"], params["b1"]                # (256, 512), (256,)
    w2, b2 = params["w2"], params["b2"]                # (128, 256), (128,)
    w3, b3 = params["w3"], params["b3"]                # (L, 128),   (L,)

    M, K0 = flat.shape
    H0, H1, H2 = w0.shape[0], w1.shape[0], w2.shape[0]
    num_labels = w3.shape[0]
    out_cols = _round_up(num_labels, 128)              # lane-dense output

    # Transpose to (in, out); zero-pad the final layer to a lane-dense width.
    w0t = w0.T
    w1t = w1.T
    w2t = w2.T
    w3t = jnp.zeros((H2, out_cols), flat.dtype).at[:, :num_labels].set(w3.T)
    b3p = jnp.zeros((1, out_cols), flat.dtype).at[:, :num_labels].set(b3[None, :])

    # Pad rows to a sublane-aligned tile multiple and grid over them.
    m_aligned = _round_up(M, 8)
    tm = min(tile_m, m_aligned)
    Mp = _round_up(M, tm)
    x_pad = jnp.pad(flat, ((0, Mp - M), (0, 0)))

    grid = (Mp // tm,)
    resident = lambda i: (0, 0)   # weights/biases: same block every step

    flops = 2 * Mp * (K0 * H0 + H0 * H1 + H1 * H2 + H2 * out_cols)
    bytes_accessed = 4 * (Mp * K0 + Mp * out_cols
                          + K0 * H0 + H0 * H1 + H1 * H2 + H2 * out_cols
                          + H0 + H1 + H2 + out_cols)

    out_pad = pl.pallas_call(
        _fused_mlp_kernel,
        out_shape=jax.ShapeDtypeStruct((Mp, out_cols), jnp.float32),
        grid_spec=pltpu.PrefetchScalarGridSpec(
            num_scalar_prefetch=0,
            grid=grid,
            in_specs=[
                pl.BlockSpec((tm, K0), lambda i: (i, 0)),   # row tile (pipelined)
                pl.BlockSpec((K0, H0), resident),
                pl.BlockSpec((1, H0), resident),
                pl.BlockSpec((H0, H1), resident),
                pl.BlockSpec((1, H1), resident),
                pl.BlockSpec((H1, H2), resident),
                pl.BlockSpec((1, H2), resident),
                pl.BlockSpec((H2, out_cols), resident),
                pl.BlockSpec((1, out_cols), resident),
            ],
            out_specs=pl.BlockSpec((tm, out_cols), lambda i: (i, 0)),
        ),
        compiler_params=pltpu.CompilerParams(
            dimension_semantics=("parallel",)),
        cost_estimate=pl.CostEstimate(
            flops=flops, transcendentals=0, bytes_accessed=bytes_accessed),
    )(x_pad, w0t, b0[None, :], w1t, b1[None, :], w2t, b2[None, :], w3t, b3p)

    return out_pad[:M, :num_labels]


# ---------------------------------------------------------------------------
# Pure-JAX reference (no Pallas) for correctness checking
# ---------------------------------------------------------------------------
def reference_forward(x, params):
    hp = lax.Precision.HIGHEST
    pooled = lax.reduce_window(
        x, -jnp.inf, lax.max,
        window_dimensions=(1, 1, POOL_K, POOL_K, POOL_K),
        window_strides=(1, 1, POOL_K, POOL_K, POOL_K),
        padding="VALID")
    h = pooled.reshape(x.shape[0], -1)
    h = _leaky_relu(jnp.dot(h, params["w0"].T, precision=hp) + params["b0"])
    h = _leaky_relu(jnp.dot(h, params["w1"].T, precision=hp) + params["b1"])
    h = _leaky_relu(jnp.dot(h, params["w2"].T, precision=hp) + params["b2"])
    return jnp.dot(h, params["w3"].T, precision=hp) + params["b3"]


if __name__ == "__main__":
    # Small shapes consistent with the module: batch=2, channels=4, spatial=10
    # (10 / pool 5 = 2) -> flatten gives 4*2*2*2 = 32 features for LazyLinear.
    N, C, D, H, W = 2, 4, 10, 10, 10

    key = jax.random.PRNGKey(0)
    ks = jax.random.split(key, 9)
    x = jax.random.normal(ks[0], (N, C, D, H, W), dtype=jnp.float32)

    K0 = C * (D // POOL_K) * (H // POOL_K) * (W // POOL_K)   # 32

    def init_linear(kw, kb, fan_in, fan_out):
        bound = 1.0 / (fan_in ** 0.5)                        # PyTorch-style init
        w = jax.random.uniform(kw, (fan_out, fan_in), jnp.float32, -bound, bound)
        b = jax.random.uniform(kb, (fan_out,), jnp.float32, -bound, bound)
        return w, b

    w0, b0 = init_linear(ks[1], ks[2], K0, 512)
    w1, b1 = init_linear(ks[3], ks[4], 512, 256)
    w2, b2 = init_linear(ks[5], ks[6], 256, 128)
    w3, b3 = init_linear(ks[7], ks[8], 128, NUM_LABELS)
    params = dict(w0=w0, b0=b0, w1=w1, b1=b1, w2=w2, b2=b2, w3=w3, b3=b3)

    fwd = jax.jit(functools.partial(fully_connected_forward))
    y = jax.block_until_ready(fwd(x, params))

    ref = reference_forward(x, params)
    assert y.shape == (N, NUM_LABELS), y.shape
    assert jnp.allclose(y, ref, atol=5e-3, rtol=5e-3), float(jnp.max(jnp.abs(y - ref)))

    print("KERNEL_OK")
</pallas_src>

<mosaic_0001>
module attributes {stable_mosaic.version = 11 : i64} {
  func.func @_fused_mlp_kernel(%arg0: i32, %arg1: memref<8x32xf32, #tpu.memory_space<vmem>>, %arg2: memref<32x512xf32, #tpu.memory_space<vmem>>, %arg3: memref<1x512xf32, #tpu.memory_space<vmem>>, %arg4: memref<512x256xf32, #tpu.memory_space<vmem>>, %arg5: memref<1x256xf32, #tpu.memory_space<vmem>>, %arg6: memref<256x128xf32, #tpu.memory_space<vmem>>, %arg7: memref<1x128xf32, #tpu.memory_space<vmem>>, %arg8: memref<128x128xf32, #tpu.memory_space<vmem>>, %arg9: memref<1x128xf32, #tpu.memory_space<vmem>>, %arg10: memref<8x128xf32, #tpu.memory_space<vmem>>) attributes {dimension_semantics = [#tpu.dimension_semantics<parallel>], iteration_bounds = array<i64: 1>, scalar_prefetch = 0 : i64, scratch_operands = 0 : i64, tpu.core_type = #tpu.core_type<tc>, window_params = [{transform_indices = @transform_0, window_bounds = array<i64: 8, 32>}, {pipeline_mode = #tpu.pipeline_mode<synchronous>, transform_indices = @transform_1, window_bounds = array<i64: 32, 512>}, {pipeline_mode = #tpu.pipeline_mode<synchronous>, transform_indices = @transform_2, window_bounds = array<i64: 1, 512>}, {pipeline_mode = #tpu.pipeline_mode<synchronous>, transform_indices = @transform_3, window_bounds = array<i64: 512, 256>}, {pipeline_mode = #tpu.pipeline_mode<synchronous>, transform_indices = @transform_4, window_bounds = array<i64: 1, 256>}, {pipeline_mode = #tpu.pipeline_mode<synchronous>, transform_indices = @transform_5, window_bounds = array<i64: 256, 128>}, {pipeline_mode = #tpu.pipeline_mode<synchronous>, transform_indices = @transform_6, window_bounds = array<i64: 1, 128>}, {pipeline_mode = #tpu.pipeline_mode<synchronous>, transform_indices = @transform_7, window_bounds = array<i64: 128, 128>}, {pipeline_mode = #tpu.pipeline_mode<synchronous>, transform_indices = @transform_8, window_bounds = array<i64: 1, 128>}, {transform_indices = @transform_9, window_bounds = array<i64: 8, 128>}]} {
    %c0 = arith.constant 0 : index
    %c0_0 = arith.constant 0 : index
    %0 = vector.load %arg1[%c0, %c0_0] : memref<8x32xf32, #tpu.memory_space<vmem>>, vector<8x32xf32>
    %c0_1 = arith.constant 0 : index
    %c0_2 = arith.constant 0 : index
    %1 = vector.load %arg2[%c0_1, %c0_2] : memref<32x512xf32, #tpu.memory_space<vmem>>, vector<32x512xf32>
    %cst = arith.constant dense<0.000000e+00> : vector<8x512xf32>
    %2 = tpu.matmul %0, %1, %cst {dimension_numbers = #tpu.dot_dimension_numbers<[1], [0], [0], [1], [0, 0, 1, 1], [], []>} : vector<8x32xf32>, vector<32x512xf32>, vector<8x512xf32> -> vector<8x512xf32>
    %c0_3 = arith.constant 0 : index
    %c0_4 = arith.constant 0 : index
    %3 = vector.load %arg3[%c0_3, %c0_4] : memref<1x512xf32, #tpu.memory_space<vmem>>, vector<1x512xf32>
    %4 = vector.broadcast %3 : vector<1x512xf32> to vector<8x512xf32>
    %5 = arith.addf %2, %4 : vector<8x512xf32>
    %cst_5 = arith.constant 0.000000e+00 : f32
    %6 = vector.broadcast %cst_5 : f32 to vector<8x512xf32>
    %7 = arith.cmpf ogt, %5, %6 : vector<8x512xf32>
    %cst_6 = arith.constant 0.00999999977 : f32
    %8 = vector.broadcast %cst_6 : f32 to vector<8x512xf32>
    %9 = arith.mulf %8, %5 : vector<8x512xf32>
    %10 = arith.select %7, %5, %9 : vector<8x512xi1>, vector<8x512xf32>
    %c0_7 = arith.constant 0 : index
    %c0_8 = arith.constant 0 : index
    %11 = vector.load %arg4[%c0_7, %c0_8] : memref<512x256xf32, #tpu.memory_space<vmem>>, vector<512x256xf32>
    %cst_9 = arith.constant dense<0.000000e+00> : vector<8x256xf32>
    %12 = tpu.matmul %10, %11, %cst_9 {dimension_numbers = #tpu.dot_dimension_numbers<[1], [0], [0], [1], [0, 0, 1, 1], [], []>} : vector<8x512xf32>, vector<512x256xf32>, vector<8x256xf32> -> vector<8x256xf32>
    %c0_10 = arith.constant 0 : index
    %c0_11 = arith.constant 0 : index
    %13 = vector.load %arg5[%c0_10, %c0_11] : memref<1x256xf32, #tpu.memory_space<vmem>>, vector<1x256xf32>
    %14 = vector.broadcast %13 : vector<1x256xf32> to vector<8x256xf32>
    %15 = arith.addf %12, %14 : vector<8x256xf32>
    %cst_12 = arith.constant 0.000000e+00 : f32
    %16 = vector.broadcast %cst_12 : f32 to vector<8x256xf32>
    %17 = arith.cmpf ogt, %15, %16 : vector<8x256xf32>
    %cst_13 = arith.constant 0.00999999977 : f32
    %18 = vector.broadcast %cst_13 : f32 to vector<8x256xf32>
    %19 = arith.mulf %18, %15 : vector<8x256xf32>
    %20 = arith.select %17, %15, %19 : vector<8x256xi1>, vector<8x256xf32>
    %c0_14 = arith.constant 0 : index
    %c0_15 = arith.constant 0 : index
    %21 = vector.load %arg6[%c0_14, %c0_15] : memref<256x128xf32, #tpu.memory_space<vmem>>, vector<256x128xf32>
    %cst_16 = arith.constant dense<0.000000e+00> : vector<8x128xf32>
    %22 = tpu.matmul %20, %21, %cst_16 {dimension_numbers = #tpu.dot_dimension_numbers<[1], [0], [0], [1], [0, 0, 1, 1], [], []>} : vector<8x256xf32>, vector<256x128xf32>, vector<8x128xf32> -> vector<8x128xf32>
    %c0_17 = arith.constant 0 : index
    %c0_18 = arith.constant 0 : index
    %23 = vector.load %arg7[%c0_17, %c0_18] : memref<1x128xf32, #tpu.memory_space<vmem>>, vector<1x128xf32>
    %24 = vector.broadcast %23 : vector<1x128xf32> to vector<8x128xf32>
    %25 = arith.addf %22, %24 : vector<8x128xf32>
    %cst_19 = arith.constant 0.000000e+00 : f32
    %26 = vector.broadcast %cst_19 : f32 to vector<8x128xf32>
    %27 = arith.cmpf ogt, %25, %26 : vector<8x128xf32>
    %cst_20 = arith.constant 0.00999999977 : f32
    %28 = vector.broadcast %cst_20 : f32 to vector<8x128xf32>
    %29 = arith.mulf %28, %25 : vector<8x128xf32>
    %30 = arith.select %27, %25, %29 : vector<8x128xi1>, vector<8x128xf32>
    %c0_21 = arith.constant 0 : index
    %c0_22 = arith.constant 0 : index
    %31 = vector.load %arg8[%c0_21, %c0_22] : memref<128x128xf32, #tpu.memory_space<vmem>>, vector<128x128xf32>
    %cst_23 = arith.constant dense<0.000000e+00> : vector<8x128xf32>
    %32 = tpu.matmul %30, %31, %cst_23 {dimension_numbers = #tpu.dot_dimension_numbers<[1], [0], [0], [1], [0, 0, 1, 1], [], []>} : vector<8x128xf32>, vector<128x128xf32>, vector<8x128xf32> -> vector<8x128xf32>
    %c0_24 = arith.constant 0 : index
    %c0_25 = arith.constant 0 : index
    %33 = vector.load %arg9[%c0_24, %c0_25] : memref<1x128xf32, #tpu.memory_space<vmem>>, vector<1x128xf32>
    %34 = vector.broadcast %33 : vector<1x128xf32> to vector<8x128xf32>
    %35 = arith.addf %32, %34 : vector<8x128xf32>
    %c0_26 = arith.constant 0 : index
    %c0_27 = arith.constant 0 : index
    %36 = vector.load %arg10[%c0_26, %c0_27] : memref<8x128xf32, #tpu.memory_space<vmem>>, vector<8x128xf32>
    tpu.vector_store %arg10[%c0_26, %c0_27], %35 {strides = array<i32>} : memref<8x128xf32, #tpu.memory_space<vmem>>, vector<8x128xf32>,
    return
  }
  func.func @transform_0(%arg0: i32) -> (i32, i32) {
    %c0_i32 = arith.constant 0 : i32
    %c0_i32_0 = arith.constant 0 : i32
    return %arg0, %c0_i32 : i32, i32
  }
  func.func @transform_1(%arg0: i32) -> (i32, i32) {
    %c0_i32 = arith.constant 0 : i32
    %c0_i32_0 = arith.constant 0 : i32
    %c0_i32_1 = arith.constant 0 : i32
    return %c0_i32, %c0_i32_0 : i32, i32
  }
  func.func @transform_2(%arg0: i32) -> (i32, i32) {
    %c0_i32 = arith.constant 0 : i32
    %c0_i32_0 = arith.constant 0 : i32
    %c0_i32_1 = arith.constant 0 : i32
    return %c0_i32, %c0_i32_0 : i32, i32
  }
  func.func @transform_3(%arg0: i32) -> (i32, i32) {
    %c0_i32 = arith.constant 0 : i32
    %c0_i32_0 = arith.constant 0 : i32
    %c0_i32_1 = arith.constant 0 : i32
    return %c0_i32, %c0_i32_0 : i32, i32
  }
  func.func @transform_4(%arg0: i32) -> (i32, i32) {
    %c0_i32 = arith.constant 0 : i32
    %c0_i32_0 = arith.constant 0 : i32
    %c0_i32_1 = arith.constant 0 : i32
    return %c0_i32, %c0_i32_0 : i32, i32
  }
  func.func @transform_5(%arg0: i32) -> (i32, i32) {
    %c0_i32 = arith.constant 0 : i32
    %c0_i32_0 = arith.constant 0 : i32
    %c0_i32_1 = arith.constant 0 : i32
    return %c0_i32, %c0_i32_0 : i32, i32
  }
  func.func @transform_6(%arg0: i32) -> (i32, i32) {
    %c0_i32 = arith.constant 0 : i32
    %c0_i32_0 = arith.constant 0 : i32
    %c0_i32_1 = arith.constant 0 : i32
    return %c0_i32, %c0_i32_0 : i32, i32
  }
  func.func @transform_7(%arg0: i32) -> (i32, i32) {
    %c0_i32 = arith.constant 0 : i32
    %c0_i32_0 = arith.constant 0 : i32
    %c0_i32_1 = arith.constant 0 : i32
    return %c0_i32, %c0_i32_0 : i32, i32
  }
  func.func @transform_8(%arg0: i32) -> (i32, i32) {
    %c0_i32 = arith.constant 0 : i32
    %c0_i32_0 = arith.constant 0 : i32
    %c0_i32_1 = arith.constant 0 : i32
    return %c0_i32, %c0_i32_0 : i32, i32
  }
  func.func @transform_9(%arg0: i32) -> (i32, i32) {
    %c0_i32 = arith.constant 0 : i32
    %c0_i32_0 = arith.constant 0 : i32
    return %arg0, %c0_i32 : i32, i32
  }
}

</mosaic_0001>

<llo_original>
// kernel: fully_connected_forward.1
$region0: #{fully_connected_forward.1}
  #allocation0 [shape = 'u32[]', space=smem, size = 0x4, offset = 0x4, fixed_abs, tag = 'smem constant byte address 0x4 - core index']
  #allocation1 [shape = 'u32[72,128]{1,0:T(1,128)}', space=vmem, size = 0x9000, scoped, tag = 'internal scratch']
  %s0 = inlined_call_operand.vmem [shape: f32[8,32], index: 0, kind: input, shape index: {}]
  %s1 = inlined_call_operand.vmem [shape: f32[32,512], index: 1, kind: input, shape index: {}]
  %s2 = inlined_call_operand.vmem [shape: f32[1,512], index: 2, kind: input, shape index: {}]
  %s3 = inlined_call_operand.vmem [shape: f32[512,256], index: 3, kind: input, shape index: {}]
  %s4 = inlined_call_operand.vmem [shape: f32[1,256], index: 4, kind: input, shape index: {}]
  %s5 = inlined_call_operand.vmem [shape: f32[256,128], index: 5, kind: input, shape index: {}]
  %s6 = inlined_call_operand.vmem [shape: f32[1,128], index: 6, kind: input, shape index: {}]
  %s7 = inlined_call_operand.vmem [shape: f32[128,128], index: 7, kind: input, shape index: {}]
  %s8 = inlined_call_operand.vmem [shape: f32[1,128], index: 8, kind: input, shape index: {}]
  %s9 = inlined_call_operand.vmem [shape: f32[8,128], index: 9, kind: output, shape index: {}]
  %s10 = sld [smem:[#allocation0]]
  $region46: #{fully_connected_forward.1} parent=0
    _
  %s12 = ssub.s32 1, %s10
  %s13 = scalar_select 0, %s12, %s10
  // Predicated region
  $region2: #{fully_connected_forward.1} parent=0 // pred_check
    _
  $region3: #{fully_connected_forward.1} parent=0 // pred_check_branch
    %15 = sbr.rel (0) target = $region5
  $region4: #{fully_connected_forward.1} parent=0 // pred_region
    _
  $region5: #{fully_connected_forward.1} parent=0 // pred_fallthru
    _
  // Predicated region
  $region6: #{fully_connected_forward.1} parent=0 // pred_check
    _
  $region7: #{fully_connected_forward.1} parent=0 // pred_check_branch
    %17 = sbr.rel (0) target = $region9
  $region8: #{fully_connected_forward.1} parent=0 // pred_region
    _
  $region9: #{fully_connected_forward.1} parent=0 // pred_fallthru
    _
  // Predicated region
  $region10: #{fully_connected_forward.1} parent=0 // pred_check
    _
  $region11: #{fully_connected_forward.1} parent=0 // pred_check_branch
    %19 = sbr.rel (0) target = $region13
  $region12: #{fully_connected_forward.1} parent=0 // pred_region
    _
  $region13: #{fully_connected_forward.1} parent=0 // pred_fallthru
    _
  // Predicated region
  $region14: #{fully_connected_forward.1} parent=0 // pred_check
    _
  $region15: #{fully_connected_forward.1} parent=0 // pred_check_branch
    %21 = sbr.rel (0) target = $region17
  $region16: #{fully_connected_forward.1} parent=0 // pred_region
    _
  $region17: #{fully_connected_forward.1} parent=0 // pred_fallthru
    _
  // Predicated region
  $region18: #{fully_connected_forward.1} parent=0 // pred_check
    _
  $region19: #{fully_connected_forward.1} parent=0 // pred_check_branch
    %23 = sbr.rel (0) target = $region21
  $region20: #{fully_connected_forward.1} parent=0 // pred_region
    _
  $region21: #{fully_connected_forward.1} parent=0 // pred_fallthru
    _
  // Predicated region
  $region22: #{fully_connected_forward.1} parent=0 // pred_check
    _
  $region23: #{fully_connected_forward.1} parent=0 // pred_check_branch
    %25 = sbr.rel (0) target = $region25
  $region24: #{fully_connected_forward.1} parent=0 // pred_region
    _
  $region25: #{fully_connected_forward.1} parent=0 // pred_fallthru
    _
  // Predicated region
  $region26: #{fully_connected_forward.1} parent=0 // pred_check
    _
  $region27: #{fully_connected_forward.1} parent=0 // pred_check_branch
    %27 = sbr.rel (0) target = $region29
  $region28: #{fully_connected_forward.1} parent=0 // pred_region
    _
  $region29: #{fully_connected_forward.1} parent=0 // pred_fallthru
    _
  // Predicated region
  $region30: #{fully_connected_forward.1} parent=0 // pred_check
    _
  $region31: #{fully_connected_forward.1} parent=0 // pred_check_branch
    %29 = sbr.rel (0) target = $region33
  $region32: #{fully_connected_forward.1} parent=0 // pred_region
    _
  $region33: #{fully_connected_forward.1} parent=0 // pred_fallthru
    _
  // Predicated region
  $region34: #{fully_connected_forward.1} parent=0 // pred_check
    _
  $region35: #{fully_connected_forward.1} parent=0 // pred_check_branch
    %31 = sbr.rel (0) target = $region37
  $region36: #{fully_connected_forward.1} parent=0 // pred_region
    _
  $region37: #{fully_connected_forward.1} parent=0 // pred_fallthru
    _
  %v32 = vld [vmem:[%s0] sm:$0xff]
  %v33 = vld [vmem:[%s1] sm:$0xff]
  %v34 = vld [vmem:[%s1 + $0x8] sm:$0xff]
  %v35 = vld [vmem:[%s1 + $0x10] sm:$0xff]
  %v36 = vld [vmem:[%s1 + $0x18] sm:$0xff]
  %v37 = vld [vmem:[%s1 + $0x20] sm:$0xff]
  %v38 = vld [vmem:[%s1 + $0x28] sm:$0xff]
  %v39 = vld [vmem:[%s1 + $0x30] sm:$0xff]
  %v40 = vld [vmem:[%s1 + $0x38] sm:$0xff]
  %v41 = vld [vmem:[%s1 + $0x40] sm:$0xff]
  %v42 = vld [vmem:[%s1 + $0x48] sm:$0xff]
  %v43 = vld [vmem:[%s1 + $0x50] sm:$0xff]
  %v44 = vld [vmem:[%s1 + $0x58] sm:$0xff]
  %v45 = vld [vmem:[%s1 + $0x60] sm:$0xff]
  %v46 = vld [vmem:[%s1 + $0x68] sm:$0xff]
  %v47 = vld [vmem:[%s1 + $0x70] sm:$0xff]
  %v48 = vld [vmem:[%s1 + $0x78] sm:$0xff]
  %v49 = vld [vmem:[%s2] sm:$0xf]
  %v51 = vperm.slane %v49, 0
  %v52 = vperm.slane %v49, 1
  %v53 = vperm.slane %v49, 2
  %v54 = vperm.slane %v49, 3
  %vm59 = vcmask 261120
  %v61 = vsel %vm59, %v32, 0
  %63 = vmatpush.msra.mxu0 0.0
  %64 = vmatpush.msra.mxu0 0.0
  %65 = vmatpush.msra.mxu0 0.0
  %66 = vmatpush.msra.mxu0 0.0
  %67 = vmatpush.msra.mxu0 0.0
  %68 = vmatpush.msra.mxu0 0.0
  %69 = vmatpush.msra.mxu0 0.0
  %70 = vmatpush.msra.mxu0 0.0
  %71 = vmatpush.msra.mxu0 0.0
  %72 = vmatpush.msra.mxu0 0.0
  %73 = vmatpush.msra.mxu0 0.0
  %74 = vmatpush.msra.mxu0 0.0
  %75 = vmatpush.msra.mxu0 %v45
  %76 = vmatpush.msra.mxu0 %v41
  %77 = vmatpush.msra.mxu0 %v37
  %78 = vmatpush.msra.mxu0 %v33
  %79 = vmatmul.f32.gmra.mxu0 %v61
  %v80 = vpop.f32.mrf.mxu0
  %v81 = vadd.f32 %v51, %v80
  %82 = vdwg.mxu0
  %83 = vmatpush.msra.mxu0 0.0
  %84 = vmatpush.msra.mxu0 0.0
  %85 = vmatpush.msra.mxu0 0.0
  %86 = vmatpush.msra.mxu0 0.0
  %87 = vmatpush.msra.mxu0 0.0
  %88 = vmatpush.msra.mxu0 0.0
  %89 = vmatpush.msra.mxu0 0.0
  %90 = vmatpush.msra.mxu0 0.0
  %91 = vmatpush.msra.mxu0 0.0
  %92 = vmatpush.msra.mxu0 0.0
  %93 = vmatpush.msra.mxu0 0.0
  %94 = vmatpush.msra.mxu0 0.0
  %95 = vmatpush.msra.mxu0 %v46
  %96 = vmatpush.msra.mxu0 %v42
  %97 = vmatpush.msra.mxu0 %v38
  %98 = vmatpush.msra.mxu0 %v34
  %99 = vmatmul.f32.gmra.mxu0 %v61
  %v100 = vpop.f32.mrf.mxu0
  %v101 = vadd.f32 %v52, %v100
  %102 = vdwg.mxu0
  %103 = vmatpush.msra.mxu0 0.0
  %104 = vmatpush.msra.mxu0 0.0
  %105 = vmatpush.msra.mxu0 0.0
  %106 = vmatpush.msra.mxu0 0.0
  %107 = vmatpush.msra.mxu0 0.0
  %108 = vmatpush.msra.mxu0 0.0
  %109 = vmatpush.msra.mxu0 0.0
  %110 = vmatpush.msra.mxu0 0.0
  %111 = vmatpush.msra.mxu0 0.0
  %112 = vmatpush.msra.mxu0 0.0
  %113 = vmatpush.msra.mxu0 0.0
  %114 = vmatpush.msra.mxu0 0.0
  %115 = vmatpush.msra.mxu0 %v47
  %116 = vmatpush.msra.mxu0 %v43
  %117 = vmatpush.msra.mxu0 %v39
  %118 = vmatpush.msra.mxu0 %v35
  %119 = vmatmul.f32.gmra.mxu0 %v61
  %v120 = vpop.f32.mrf.mxu0
  %v121 = vadd.f32 %v53, %v120
  %122 = vdwg.mxu0
  %123 = vmatpush.msra.mxu0 0.0
  %124 = vmatpush.msra.mxu0 0.0
  %125 = vmatpush.msra.mxu0 0.0
  %126 = vmatpush.msra.mxu0 0.0
  %127 = vmatpush.msra.mxu0 0.0
  %128 = vmatpush.msra.mxu0 0.0
  %129 = vmatpush.msra.mxu0 0.0
  %130 = vmatpush.msra.mxu0 0.0
  %131 = vmatpush.msra.mxu0 0.0
  %132 = vmatpush.msra.mxu0 0.0
  %133 = vmatpush.msra.mxu0 0.0
  %134 = vmatpush.msra.mxu0 0.0
  %135 = vmatpush.msra.mxu0 %v48
  %136 = vmatpush.msra.mxu0 %v44
  %137 = vmatpush.msra.mxu0 %v40
  %138 = vmatpush.msra.mxu0 %v36
  %139 = vmatmul.f32.gmra.mxu0 %v61
  %v140 = vpop.f32.mrf.mxu0
  %v141 = vadd.f32 %v54, %v140
  %142 = vdwg.mxu0
  %vm143 = vcmp.gt.f32.partialorder %v81, 0.0
  %vm144 = vcmp.gt.f32.partialorder %v101, 0.0
  %vm145 = vcmp.gt.f32.partialorder %v121, 0.0
  %vm146 = vcmp.gt.f32.partialorder %v141, 0.0
  %v147 = vmul.f32 %v81, 0.01
  %v148 = vmul.f32 %v101, 0.01
  %v149 = vmul.f32 %v121, 0.01
  %v150 = vmul.f32 %v141, 0.01
  %v151 = vsel %vm143, %v81, %v147
  %v152 = vsel %vm144, %v101, %v148
  %v153 = vsel %vm145, %v121, %v149
  %v154 = vsel %vm146, %v141, %v150
  %v155 = vld [vmem:[%s3] sm:$0xff]
  %v156 = vld [vmem:[%s3 + $0x8] sm:$0xff]
  %v157 = vld [vmem:[%s3 + $0x10] sm:$0xff]
  %v158 = vld [vmem:[%s3 + $0x18] sm:$0xff]
  %v159 = vld [vmem:[%s3 + $0x20] sm:$0xff]
  %v160 = vld [vmem:[%s3 + $0x28] sm:$0xff]
  %v161 = vld [vmem:[%s3 + $0x30] sm:$0xff]
  %v162 = vld [vmem:[%s3 + $0x38] sm:$0xff]
  %v163 = vld [vmem:[%s3 + $0x40] sm:$0xff]
  %v164 = vld [vmem:[%s3 + $0x48] sm:$0xff]
  %v165 = vld [vmem:[%s3 + $0x50] sm:$0xff]
  %v166 = vld [vmem:[%s3 + $0x58] sm:$0xff]
  %v167 = vld [vmem:[%s3 + $0x60] sm:$0xff]
  %v168 = vld [vmem:[%s3 + $0x68] sm:$0xff]
  %v169 = vld [vmem:[%s3 + $0x70] sm:$0xff]
  %v170 = vld [vmem:[%s3 + $0x78] sm:$0xff]
  %v171 = vld [vmem:[%s3 + $0x80] sm:$0xff]
  %v172 = vld [vmem:[%s3 + $0x88] sm:$0xff]
  %v173 = vld [vmem:[%s3 + $0x90] sm:$0xff]
  %v174 = vld [vmem:[%s3 + $0x98] sm:$0xff]
  %v175 = vld [vmem:[%s3 + $0xa0] sm:$0xff]
  %v176 = vld [vmem:[%s3 + $0xa8] sm:$0xff]
  %v177 = vld [vmem:[%s3 + $0xb0] sm:$0xff]
  %v178 = vld [vmem:[%s3 + $0xb8] sm:$0xff]
  %v179 = vld [vmem:[%s3 + $0xc0] sm:$0xff]
  %v180 = vld [vmem:[%s3 + $0xc8] sm:$0xff]
  %v181 = vld [vmem:[%s3 + $0xd0] sm:$0xff]
  %v182 = vld [vmem:[%s3 + $0xd8] sm:$0xff]
  %v183 = vld [vmem:[%s3 + $0xe0] sm:$0xff]
  %v184 = vld [vmem:[%s3 + $0xe8] sm:$0xff]
  %v185 = vld [vmem:[%s3 + $0xf0] sm:$0xff]
  %v186 = vld [vmem:[%s3 + $0xf8] sm:$0xff]
  %v187 = vld [vmem:[%s3 + $0x100] sm:$0xff]
  %v188 = vld [vmem:[%s3 + $0x108] sm:$0xff]
  %v189 = vld [vmem:[%s3 + $0x110] sm:$0xff]
  %v190 = vld [vmem:[%s3 + $0x118] sm:$0xff]
  %v191 = vld [vmem:[%s3 + $0x120] sm:$0xff]
  %v192 = vld [vmem:[%s3 + $0x128] sm:$0xff]
  %v193 = vld [vmem:[%s3 + $0x130] sm:$0xff]
  %v194 = vld [vmem:[%s3 + $0x138] sm:$0xff]
  %v195 = vld [vmem:[%s3 + $0x140] sm:$0xff]
  %v196 = vld [vmem:[%s3 + $0x148] sm:$0xff]
  %v197 = vld [vmem:[%s3 + $0x150] sm:$0xff]
  %v198 = vld [vmem:[%s3 + $0x158] sm:$0xff]
  %v199 = vld [vmem:[%s3 + $0x160] sm:$0xff]
  %v200 = vld [vmem:[%s3 + $0x168] sm:$0xff]
  %v201 = vld [vmem:[%s3 + $0x170] sm:$0xff]
  %v202 = vld [vmem:[%s3 + $0x178] sm:$0xff]
  %v203 = vld [vmem:[%s3 + $0x180] sm:$0xff]
  %v204 = vld [vmem:[%s3 + $0x188] sm:$0xff]
  %v205 = vld [vmem:[%s3 + $0x190] sm:$0xff]
  %v206 = vld [vmem:[%s3 + $0x198] sm:$0xff]
  %v207 = vld [vmem:[%s3 + $0x1a0] sm:$0xff]
  %v208 = vld [vmem:[%s3 + $0x1a8] sm:$0xff]
  %v209 = vld [vmem:[%s3 + $0x1b0] sm:$0xff]
  %v210 = vld [vmem:[%s3 + $0x1b8] sm:$0xff]
  %v211 = vld [vmem:[%s3 + $0x1c0] sm:$0xff]
  %v212 = vld [vmem:[%s3 + $0x1c8] sm:$0xff]
  %v213 = vld [vmem:[%s3 + $0x1d0] sm:$0xff]
  %v214 = vld [vmem:[%s3 + $0x1d8] sm:$0xff]
  %v215 = vld [vmem:[%s3 + $0x1e0] sm:$0xff]
  %v216 = vld [vmem:[%s3 + $0x1e8] sm:$0xff]
  %v217 = vld [vmem:[%s3 + $0x1f0] sm:$0xff]
  %v218 = vld [vmem:[%s3 + $0x1f8] sm:$0xff]
  %v219 = vld [vmem:[%s3 + $0x200] sm:$0xff]
  %v220 = vld [vmem:[%s3 + $0x208] sm:$0xff]
  %v221 = vld [vmem:[%s3 + $0x210] sm:$0xff]
  %v222 = vld [vmem:[%s3 + $0x218] sm:$0xff]
  %v223 = vld [vmem:[%s3 + $0x220] sm:$0xff]
  %v224 = vld [vmem:[%s3 + $0x228] sm:$0xff]
  %v225 = vld [vmem:[%s3 + $0x230] sm:$0xff]
  %v226 = vld [vmem:[%s3 + $0x238] sm:$0xff]
  %v227 = vld [vmem:[%s3 + $0x240] sm:$0xff]
  %v228 = vld [vmem:[%s3 + $0x248] sm:$0xff]
  %v229 = vld [vmem:[%s3 + $0x250] sm:$0xff]
  %v230 = vld [vmem:[%s3 + $0x258] sm:$0xff]
  %v231 = vld [vmem:[%s3 + $0x260] sm:$0xff]
  %v232 = vld [vmem:[%s3 + $0x268] sm:$0xff]
  %v233 = vld [vmem:[%s3 + $0x270] sm:$0xff]
  %v234 = vld [vmem:[%s3 + $0x278] sm:$0xff]
  %v235 = vld [vmem:[%s3 + $0x280] sm:$0xff]
  %v236 = vld [vmem:[%s3 + $0x288] sm:$0xff]
  %v237 = vld [vmem:[%s3 + $0x290] sm:$0xff]
  %v238 = vld [vmem:[%s3 + $0x298] sm:$0xff]
  %v239 = vld [vmem:[%s3 + $0x2a0] sm:$0xff]
  %v240 = vld [vmem:[%s3 + $0x2a8] sm:$0xff]
  %v241 = vld [vmem:[%s3 + $0x2b0] sm:$0xff]
  %v242 = vld [vmem:[%s3 + $0x2b8] sm:$0xff]
  %v243 = vld [vmem:[%s3 + $0x2c0] sm:$0xff]
  %v244 = vld [vmem:[%s3 + $0x2c8] sm:$0xff]
  %v245 = vld [vmem:[%s3 + $0x2d0] sm:$0xff]
  %v246 = vld [vmem:[%s3 + $0x2d8] sm:$0xff]
  %v247 = vld [vmem:[%s3 + $0x2e0] sm:$0xff]
  %v248 = vld [vmem:[%s3 + $0x2e8] sm:$0xff]
  %v249 = vld [vmem:[%s3 + $0x2f0] sm:$0xff]
  %v250 = vld [vmem:[%s3 + $0x2f8] sm:$0xff]
  %v251 = vld [vmem:[%s3 + $0x300] sm:$0xff]
  %v252 = vld [vmem:[%s3 + $0x308] sm:$0xff]
  %v253 = vld [vmem:[%s3 + $0x310] sm:$0xff]
  %v254 = vld [vmem:[%s3 + $0x318] sm:$0xff]
  %v255 = vld [vmem:[%s3 + $0x320] sm:$0xff]
  %v256 = vld [vmem:[%s3 + $0x328] sm:$0xff]
  %v257 = vld [vmem:[%s3 + $0x330] sm:$0xff]
  %v258 = vld [vmem:[%s3 + $0x338] sm:$0xff]
  %v259 = vld [vmem:[%s3 + $0x340] sm:$0xff]
  %v260 = vld [vmem:[%s3 + $0x348] sm:$0xff]
  %v261 = vld [vmem:[%s3 + $0x350] sm:$0xff]
  %v262 = vld [vmem:[%s3 + $0x358] sm:$0xff]
  %v263 = vld [vmem:[%s3 + $0x360] sm:$0xff]
  %v264 = vld [vmem:[%s3 + $0x368] sm:$0xff]
  %v265 = vld [vmem:[%s3 + $0x370] sm:$0xff]
  %v266 = vld [vmem:[%s3 + $0x378] sm:$0xff]
  %v267 = vld [vmem:[%s3 + $0x380] sm:$0xff]
  %v268 = vld [vmem:[%s3 + $0x388] sm:$0xff]
  %v269 = vld [vmem:[%s3 + $0x390] sm:$0xff]
  %v270 = vld [vmem:[%s3 + $0x398] sm:$0xff]
  %v271 = vld [vmem:[%s3 + $0x3a0] sm:$0xff]
  %v272 = vld [vmem:[%s3 + $0x3a8] sm:$0xff]
  %v273 = vld [vmem:[%s3 + $0x3b0] sm:$0xff]
  %v274 = vld [vmem:[%s3 + $0x3b8] sm:$0xff]
  %v275 = vld [vmem:[%s3 + $0x3c0] sm:$0xff]
  %v276 = vld [vmem:[%s3 + $0x3c8] sm:$0xff]
  %v277 = vld [vmem:[%s3 + $0x3d0] sm:$0xff]
  %v278 = vld [vmem:[%s3 + $0x3d8] sm:$0xff]
  %v279 = vld [vmem:[%s3 + $0x3e0] sm:$0xff]
  %v280 = vld [vmem:[%s3 + $0x3e8] sm:$0xff]
  %v281 = vld [vmem:[%s3 + $0x3f0] sm:$0xff]
  %v282 = vld [vmem:[%s3 + $0x3f8] sm:$0xff]
  %v283 = vld [vmem:[%s4] sm:$0x3]
  %v285 = vperm.slane %v283, 0
  %v286 = vperm.slane %v283, 1
  %289 = vmatpush.msra.mxu0 %v185
  %290 = vmatpush.msra.mxu0 %v183
  %291 = vmatpush.msra.mxu0 %v181
  %292 = vmatpush.msra.mxu0 %v179
  %293 = vmatpush.msra.mxu0 %v177
  %294 = vmatpush.msra.mxu0 %v175
  %295 = vmatpush.msra.mxu0 %v173
  %296 = vmatpush.msra.mxu0 %v171
  %297 = vmatpush.msra.mxu0 %v169
  %298 = vmatpush.msra.mxu0 %v167
  %299 = vmatpush.msra.mxu0 %v165
  %300 = vmatpush.msra.mxu0 %v163
  %301 = vmatpush.msra.mxu0 %v161
  %302 = vmatpush.msra.mxu0 %v159
  %303 = vmatpush.msra.mxu0 %v157
  %304 = vmatpush.msra.mxu0 %v155
  %305 = vmatmul.f32.gmra.mxu0 %v151
  %v306 = vpop.f32.mrf.mxu0
  %v307 = vadd.f32 %v285, %v306
  %308 = vdwg.mxu0
  %309 = vmatpush.msra.mxu0 %v217
  %310 = vmatpush.msra.mxu0 %v215
  %311 = vmatpush.msra.mxu0 %v213
  %312 = vmatpush.msra.mxu0 %v211
  %313 = vmatpush.msra.mxu0 %v209
  %314 = vmatpush.msra.mxu0 %v207
  %315 = vmatpush.msra.mxu0 %v205
  %316 = vmatpush.msra.mxu0 %v203
  %317 = vmatpush.msra.mxu0 %v201
  %318 = vmatpush.msra.mxu0 %v199
  %319 = vmatpush.msra.mxu0 %v197
  %320 = vmatpush.msra.mxu0 %v195
  %321 = vmatpush.msra.mxu0 %v193
  %322 = vmatpush.msra.mxu0 %v191
  %323 = vmatpush.msra.mxu0 %v189
  %324 = vmatpush.msra.mxu0 %v187
  %325 = vmatmul.f32.gmra.mxu0 %v152
  %v326 = vpop.f32.mrf.mxu0
  %v327 = vadd.f32 %v307, %v326
  %328 = vdwg.mxu0
  %329 = vmatpush.msra.mxu0 %v249
  %330 = vmatpush.msra.mxu0 %v247
  %331 = vmatpush.msra.mxu0 %v245
  %332 = vmatpush.msra.mxu0 %v243
  %333 = vmatpush.msra.mxu0 %v241
  %334 = vmatpush.msra.mxu0 %v239
  %335 = vmatpush.msra.mxu0 %v237
  %336 = vmatpush.msra.mxu0 %v235
  %337 = vmatpush.msra.mxu0 %v233
  %338 = vmatpush.msra.mxu0 %v231
  %339 = vmatpush.msra.mxu0 %v229
  %340 = vmatpush.msra.mxu0 %v227
  %341 = vmatpush.msra.mxu0 %v225
  %342 = vmatpush.msra.mxu0 %v223
  %343 = vmatpush.msra.mxu0 %v221
  %344 = vmatpush.msra.mxu0 %v219
  %345 = vmatmul.f32.gmra.mxu0 %v153
  %v346 = vpop.f32.mrf.mxu0
  %v347 = vadd.f32 %v327, %v346
  %348 = vdwg.mxu0
  %349 = vmatpush.msra.mxu0 %v281
  %350 = vmatpush.msra.mxu0 %v279
  %351 = vmatpush.msra.mxu0 %v277
  %352 = vmatpush.msra.mxu0 %v275
  %353 = vmatpush.msra.mxu0 %v273
  %354 = vmatpush.msra.mxu0 %v271
  %355 = vmatpush.msra.mxu0 %v269
  %356 = vmatpush.msra.mxu0 %v267
  %357 = vmatpush.msra.mxu0 %v265
  %358 = vmatpush.msra.mxu0 %v263
  %359 = vmatpush.msra.mxu0 %v261
  %360 = vmatpush.msra.mxu0 %v259
  %361 = vmatpush.msra.mxu0 %v257
  %362 = vmatpush.msra.mxu0 %v255
  %363 = vmatpush.msra.mxu0 %v253
  %364 = vmatpush.msra.mxu0 %v251
  %365 = vmatmul.f32.gmra.mxu0 %v154
  %v366 = vpop.f32.mrf.mxu0
  %v367 = vadd.f32 %v347, %v366
  %368 = vdwg.mxu0
  %369 = vmatpush.msra.mxu0 %v186
  %370 = vmatpush.msra.mxu0 %v184
  %371 = vmatpush.msra.mxu0 %v182
  %372 = vmatpush.msra.mxu0 %v180
  %373 = vmatpush.msra.mxu0 %v178
  %374 = vmatpush.msra.mxu0 %v176
  %375 = vmatpush.msra.mxu0 %v174
  %376 = vmatpush.msra.mxu0 %v172
  %377 = vmatpush.msra.mxu0 %v170
  %378 = vmatpush.msra.mxu0 %v168
  %379 = vmatpush.msra.mxu0 %v166
  %380 = vmatpush.msra.mxu0 %v164
  %381 = vmatpush.msra.mxu0 %v162
  %382 = vmatpush.msra.mxu0 %v160
  %383 = vmatpush.msra.mxu0 %v158
  %384 = vmatpush.msra.mxu0 %v156
  %385 = vmatmul.f32.gmra.mxu0 %v151
  %v386 = vpop.f32.mrf.mxu0
  %v387 = vadd.f32 %v286, %v386
  %388 = vdwg.mxu0
  %389 = vmatpush.msra.mxu0 %v218
  %390 = vmatpush.msra.mxu0 %v216
  %391 = vmatpush.msra.mxu0 %v214
  %392 = vmatpush.msra.mxu0 %v212
  %393 = vmatpush.msra.mxu0 %v210
  %394 = vmatpush.msra.mxu0 %v208
  %395 = vmatpush.msra.mxu0 %v206
  %396 = vmatpush.msra.mxu0 %v204
  %397 = vmatpush.msra.mxu0 %v202
  %398 = vmatpush.msra.mxu0 %v200
  %399 = vmatpush.msra.mxu0 %v198
  %400 = vmatpush.msra.mxu0 %v196
  %401 = vmatpush.msra.mxu0 %v194
  %402 = vmatpush.msra.mxu0 %v192
  %403 = vmatpush.msra.mxu0 %v190
  %404 = vmatpush.msra.mxu0 %v188
  %405 = vmatmul.f32.gmra.mxu0 %v152
  %v406 = vpop.f32.mrf.mxu0
  %v407 = vadd.f32 %v387, %v406
  %408 = vdwg.mxu0
  %409 = vmatpush.msra.mxu0 %v250
  %410 = vmatpush.msra.mxu0 %v248
  %411 = vmatpush.msra.mxu0 %v246
  %412 = vmatpush.msra.mxu0 %v244
  %413 = vmatpush.msra.mxu0 %v242
  %414 = vmatpush.msra.mxu0 %v240
  %415 = vmatpush.msra.mxu0 %v238
  %416 = vmatpush.msra.mxu0 %v236
  %417 = vmatpush.msra.mxu0 %v234
  %418 = vmatpush.msra.mxu0 %v232
  %419 = vmatpush.msra.mxu0 %v230
  %420 = vmatpush.msra.mxu0 %v228
  %421 = vmatpush.msra.mxu0 %v226
  %422 = vmatpush.msra.mxu0 %v224
  %423 = vmatpush.msra.mxu0 %v222
  %424 = vmatpush.msra.mxu0 %v220
  %425 = vmatmul.f32.gmra.mxu0 %v153
  %v426 = vpop.f32.mrf.mxu0
  %v427 = vadd.f32 %v407, %v426
  %428 = vdwg.mxu0
  %429 = vmatpush.msra.mxu0 %v282
  %430 = vmatpush.msra.mxu0 %v280
  %431 = vmatpush.msra.mxu0 %v278
  %432 = vmatpush.msra.mxu0 %v276
  %433 = vmatpush.msra.mxu0 %v274
  %434 = vmatpush.msra.mxu0 %v272
  %435 = vmatpush.msra.mxu0 %v270
  %436 = vmatpush.msra.mxu0 %v268
  %437 = vmatpush.msra.mxu0 %v266
  %438 = vmatpush.msra.mxu0 %v264
  %439 = vmatpush.msra.mxu0 %v262
  %440 = vmatpush.msra.mxu0 %v260
  %441 = vmatpush.msra.mxu0 %v258
  %442 = vmatpush.msra.mxu0 %v256
  %443 = vmatpush.msra.mxu0 %v254
  %444 = vmatpush.msra.mxu0 %v252
  %445 = vmatmul.f32.gmra.mxu0 %v154
  %v446 = vpop.f32.mrf.mxu0
  %v447 = vadd.f32 %v427, %v446
  %448 = vdwg.mxu0
  %vm449 = vcmp.gt.f32.partialorder %v367, 0.0
  %vm450 = vcmp.gt.f32.partialorder %v447, 0.0
  %v451 = vmul.f32 %v367, 0.01
  %v452 = vmul.f32 %v447, 0.01
  %v453 = vsel %vm449, %v367, %v451
  %v454 = vsel %vm450, %v447, %v452
  %v455 = vld [vmem:[%s5] sm:$0xff]
  %v456 = vld [vmem:[%s5 + $0x8] sm:$0xff]
  %v457 = vld [vmem:[%s5 + $0x10] sm:$0xff]
  %v458 = vld [vmem:[%s5 + $0x18] sm:$0xff]
  %v459 = vld [vmem:[%s5 + $0x20] sm:$0xff]
  %v460 = vld [vmem:[%s5 + $0x28] sm:$0xff]
  %v461 = vld [vmem:[%s5 + $0x30] sm:$0xff]
  %v462 = vld [vmem:[%s5 + $0x38] sm:$0xff]
  %v463 = vld [vmem:[%s5 + $0x40] sm:$0xff]
  %v464 = vld [vmem:[%s5 + $0x48] sm:$0xff]
  %v465 = vld [vmem:[%s5 + $0x50] sm:$0xff]
  %v466 = vld [vmem:[%s5 + $0x58] sm:$0xff]
  %v467 = vld [vmem:[%s5 + $0x60] sm:$0xff]
  %v468 = vld [vmem:[%s5 + $0x68] sm:$0xff]
  %v469 = vld [vmem:[%s5 + $0x70] sm:$0xff]
  %v470 = vld [vmem:[%s5 + $0x78] sm:$0xff]
  %v471 = vld [vmem:[%s5 + $0x80] sm:$0xff]
  %v472 = vld [vmem:[%s5 + $0x88] sm:$0xff]
  %v473 = vld [vmem:[%s5 + $0x90] sm:$0xff]
  %v474 = vld [vmem:[%s5 + $0x98] sm:$0xff]
  %v475 = vld [vmem:[%s5 + $0xa0] sm:$0xff]
  %v476 = vld [vmem:[%s5 + $0xa8] sm:$0xff]
  %v477 = vld [vmem:[%s5 + $0xb0] sm:$0xff]
  %v478 = vld [vmem:[%s5 + $0xb8] sm:$0xff]
  %v479 = vld [vmem:[%s5 + $0xc0] sm:$0xff]
  %v480 = vld [vmem:[%s5 + $0xc8] sm:$0xff]
  %v481 = vld [vmem:[%s5 + $0xd0] sm:$0xff]
  %v482 = vld [vmem:[%s5 + $0xd8] sm:$0xff]
  %v483 = vld [vmem:[%s5 + $0xe0] sm:$0xff]
  %v484 = vld [vmem:[%s5 + $0xe8] sm:$0xff]
  %v485 = vld [vmem:[%s5 + $0xf0] sm:$0xff]
  %v486 = vld [vmem:[%s5 + $0xf8] sm:$0xff]
  %v487 = vld [vmem:[%s6] sm:$0x1]
  %v489 = vperm.slane %v487, 0
  %491 = vmatpush.msra.mxu0 %v470
  %492 = vmatpush.msra.mxu0 %v469
  %493 = vmatpush.msra.mxu0 %v468
  %494 = vmatpush.msra.mxu0 %v467
  %495 = vmatpush.msra.mxu0 %v466
  %496 = vmatpush.msra.mxu0 %v465
  %497 = vmatpush.msra.mxu0 %v464
  %498 = vmatpush.msra.mxu0 %v463
  %499 = vmatpush.msra.mxu0 %v462
  %500 = vmatpush.msra.mxu0 %v461
  %501 = vmatpush.msra.mxu0 %v460
  %502 = vmatpush.msra.mxu0 %v459
  %503 = vmatpush.msra.mxu0 %v458
  %504 = vmatpush.msra.mxu0 %v457
  %505 = vmatpush.msra.mxu0 %v456
  %506 = vmatpush.msra.mxu0 %v455
  %507 = vmatmul.f32.gmra.mxu0 %v453
  %v508 = vpop.f32.mrf.mxu0
  %v509 = vadd.f32 %v489, %v508
  %510 = vdwg.mxu0
  %511 = vmatpush.msra.mxu0 %v486
  %512 = vmatpush.msra.mxu0 %v485
  %513 = vmatpush.msra.mxu0 %v484
  %514 = vmatpush.msra.mxu0 %v483
  %515 = vmatpush.msra.mxu0 %v482
  %516 = vmatpush.msra.mxu0 %v481
  %517 = vmatpush.msra.mxu0 %v480
  %518 = vmatpush.msra.mxu0 %v479
  %519 = vmatpush.msra.mxu0 %v478
  %520 = vmatpush.msra.mxu0 %v477
  %521 = vmatpush.msra.mxu0 %v476
  %522 = vmatpush.msra.mxu0 %v475
  %523 = vmatpush.msra.mxu0 %v474
  %524 = vmatpush.msra.mxu0 %v473
  %525 = vmatpush.msra.mxu0 %v472
  %526 = vmatpush.msra.mxu0 %v471
  %527 = vmatmul.f32.gmra.mxu0 %v454
  %v528 = vpop.f32.mrf.mxu0
  %v529 = vadd.f32 %v509, %v528
  %530 = vdwg.mxu0
  %vm531 = vcmp.gt.f32.partialorder %v529, 0.0
  %v532 = vmul.f32 %v529, 0.01
  %v533 = vsel %vm531, %v529, %v532
  %v534 = vld [vmem:[%s7] sm:$0xff]
  %v535 = vld [vmem:[%s7 + $0x8] sm:$0xff]
  %v536 = vld [vmem:[%s7 + $0x10] sm:$0xff]
  %v537 = vld [vmem:[%s7 + $0x18] sm:$0xff]
  %v538 = vld [vmem:[%s7 + $0x20] sm:$0xff]
  %v539 = vld [vmem:[%s7 + $0x28] sm:$0xff]
  %v540 = vld [vmem:[%s7 + $0x30] sm:$0xff]
  %v541 = vld [vmem:[%s7 + $0x38] sm:$0xff]
  %v542 = vld [vmem:[%s7 + $0x40] sm:$0xff]
  %v543 = vld [vmem:[%s7 + $0x48] sm:$0xff]
  %v544 = vld [vmem:[%s7 + $0x50] sm:$0xff]
  %v545 = vld [vmem:[%s7 + $0x58] sm:$0xff]
  %v546 = vld [vmem:[%s7 + $0x60] sm:$0xff]
  %v547 = vld [vmem:[%s7 + $0x68] sm:$0xff]
  %v548 = vld [vmem:[%s7 + $0x70] sm:$0xff]
  %v549 = vld [vmem:[%s7 + $0x78] sm:$0xff]
  %v550 = vld [vmem:[%s8] sm:$0x1]
  %v552 = vperm.slane %v550, 0
  %554 = vmatpush.msra.mxu0 %v549
  %555 = vmatpush.msra.mxu0 %v548
  %556 = vmatpush.msra.mxu0 %v547
  %557 = vmatpush.msra.mxu0 %v546
  %558 = vmatpush.msra.mxu0 %v545
  %559 = vmatpush.msra.mxu0 %v544
  %560 = vmatpush.msra.mxu0 %v543
  %561 = vmatpush.msra.mxu0 %v542
  %562 = vmatpush.msra.mxu0 %v541
  %563 = vmatpush.msra.mxu0 %v540
  %564 = vmatpush.msra.mxu0 %v539
  %565 = vmatpush.msra.mxu0 %v538
  %566 = vmatpush.msra.mxu0 %v537
  %567 = vmatpush.msra.mxu0 %v536
  %568 = vmatpush.msra.mxu0 %v535
  %569 = vmatpush.msra.mxu0 %v534
  %570 = vmatmul.f32.gmra.mxu0 %v533
  %v571 = vpop.f32.mrf.mxu0
  %v572 = vadd.f32 %v552, %v571
  %573 = vdwg.mxu0
  %574 = vst [vmem:[%s9] sm:$0xff] %v572
  // Predicated region
  $region38: #{fully_connected_forward.1} parent=0 // pred_check
    _
  $region39: #{fully_connected_forward.1} parent=0 // pred_check_branch
    %576 = sbr.rel (0) target = $region41
  $region40: #{fully_connected_forward.1} parent=0 // pred_region
    _
  $region41: #{fully_connected_forward.1} parent=0 // pred_fallthru
    _
  // Predicated region
  $region42: #{fully_connected_forward.1} parent=0 // pred_check
    _
  $region43: #{fully_connected_forward.1} parent=0 // pred_check_branch
    %578 = sbr.rel (0) target = $region45
  $region44: #{fully_connected_forward.1} parent=0 // pred_region
    _
  $region45: #{fully_connected_forward.1} parent=0 // pred_fallthru
    _

</llo_original>
